<compile_context>
chip_gen: v7x
topology: tpu7x:2x2x1
jax: 0.10.0
libtpu: 0.0.40
codegen_flags: <defaults>
</compile_context>

<pallas_src>
import numpy as np
import jax
import jax.numpy as jnp
from jax.experimental import pallas as pl
from jax.experimental.pallas import tpu as pltpu


# ---------------------------------------------------------------------------
# helpers (static, host-side)
# ---------------------------------------------------------------------------
def _round_up(x: int, m: int) -> int:
    return ((x + m - 1) // m) * m


# TODO(synk): PIL.Image.resize defaults to bicubic filtering; nearest-neighbor
# resampling is used here (same "resize" semantics, different filter).
def _nn_src_index(out_size: int, in_size: int) -> np.ndarray:
    """Nearest-neighbor source index per output position."""
    src = np.floor((np.arange(out_size) + 0.5) * in_size / out_size)
    return np.clip(src.astype(np.int32), 0, in_size - 1)


# ---------------------------------------------------------------------------
# Pallas kernel: column resample of a row-gathered image strip.
#   rows_ref : (1, TM, W_in)  bf16   rows already gathered into output order
#   ww_ref   : (W_in, TN)     bf16   pre-transposed one-hot column selector
#   out_ref  : (1, TM, TN)    f32
# ---------------------------------------------------------------------------
def _col_resample_kernel(rows_ref, ww_ref, out_ref):
    acc = jnp.dot(rows_ref[0], ww_ref[...], preferred_element_type=jnp.float32)
    out_ref[0] = acc.astype(out_ref.dtype)


# ---------------------------------------------------------------------------
# Wrapper mirroring DynamicScaling.forward
# ---------------------------------------------------------------------------
def dynamic_scaling(img_chw, meta, boxes, target_gsd: float):
    C, img_h, img_w = img_chw.shape

    # ---- scale-factor math (mirrors the PyTorch module exactly) -----------
    altitude = float(meta["altitude"])
    focal_len_mm = meta["focal_length"] if meta["focal_length"] is not None else 3.04
    sensor_width_mm = 3.68
    sensor_width_px = 3280
    focal_len_px = focal_len_mm * (sensor_width_px / sensor_width_mm)

    img_size_w = altitude / focal_len_px * img_w / target_gsd
    img_size_h = altitude / focal_len_px * img_h / target_gsd
    scale_factor_w = img_size_w / img_w
    scale_factor_h = img_size_h / img_h

    h_out, w_out = int(img_size_h), int(img_size_w)

    # ---- tiling: lane-dense, MXU/sublane aligned, padded -------------------
    TM = min(128, _round_up(max(h_out, 1), 8))     # sublane-aligned row tile
    TN = min(512, _round_up(max(w_out, 1), 128))   # lane-dense column tile
    h_out_pad = _round_up(max(h_out, 1), TM)
    w_out_pad = _round_up(max(w_out, 1), TN)

    # ---- row gather (memory-bound reindex -> plain JAX/XLA) ----------------
    src_h = _nn_src_index(h_out, img_h)
    src_w = _nn_src_index(w_out, img_w)
    fill_row = src_h[-1] if h_out > 0 else 0
    src_h_pad = np.concatenate(
        [src_h, np.full((h_out_pad - h_out,), fill_row, dtype=np.int32)])
    # bf16 is exact for 0..255 integer pixel values; halves DMA/VMEM bytes.
    rows = img_chw.astype(jnp.bfloat16)[:, src_h_pad, :]        # (C, h_out_pad, W_in)

    # ---- column selector, pre-transposed, bf16; pad columns are all-zero ---
    src_w_pad = np.concatenate(
        [src_w, np.full((w_out_pad - w_out,), -1, dtype=np.int32)])
    ww_t_np = (np.arange(img_w, dtype=np.int32)[:, None]
               == src_w_pad[None, :]).astype(np.float32)        # (W_in, w_out_pad)
    ww_t = jnp.asarray(ww_t_np, dtype=jnp.bfloat16)

    # ---- Pallas column-resample matmul -------------------------------------
    grid = (C, h_out_pad // TM, w_out_pad // TN)
    resized_pad = pl.pallas_call(
        _col_resample_kernel,
        out_shape=jax.ShapeDtypeStruct((C, h_out_pad, w_out_pad), jnp.float32),
        grid=grid,
        in_specs=[
            pl.BlockSpec((1, TM, img_w), lambda c, i, j: (c, i, 0)),
            pl.BlockSpec((img_w, TN), lambda c, i, j: (0, j)),
        ],
        out_specs=pl.BlockSpec((1, TM, TN), lambda c, i, j: (c, i, j)),
        compiler_params=pltpu.CompilerParams(
            dimension_semantics=("parallel", "parallel", "parallel"),
            vmem_limit_bytes=48 * 1024 * 1024,   # stays under v7x's 64 MiB VMEM
        ),
    )(rows, ww_t)

    resized = resized_pad[:, :h_out, :w_out].astype(img_chw.dtype)

    # ---- box scaling: (N, 4) multiply -> plain JAX (XLA fuses it; a separate
    # pallas_call is pure launch overhead + masked 4-lane stores) -------------
    scale_vec = jnp.array(
        [scale_factor_w, scale_factor_h, scale_factor_w, scale_factor_h],
        dtype=boxes.dtype)
    boxes_out = boxes * scale_vec

    # TODO(synk): drawing boxes / saving PNGs / exit()-on-low-altitude are
    # host-side I/O & control-flow side effects with no TPU-kernel equivalent.
    return resized, boxes_out


# ---------------------------------------------------------------------------
# Demo
# ---------------------------------------------------------------------------
if __name__ == "__main__":
    key = jax.random.PRNGKey(0)
    k_img, k_box = jax.random.split(key)

    C, H, W = 3, 16, 16
    # integer-valued pixels (0..255): exactly representable in bf16, so the
    # nearest-neighbor resize result is bit-exact vs. the f32 reference.
    img = jnp.round(jax.random.uniform(k_img, (C, H, W), dtype=jnp.float32) * 255.0)
    boxes = jax.random.uniform(k_box, (5, 4), dtype=jnp.float32) * float(W)

    meta = {"altitude": 400.0, "focal_length": 3.04}
    target_gsd = 0.05  # -> scale factor ~2.95, output 47x47

    resized, boxes_out = dynamic_scaling(img, meta, boxes, target_gsd)
    jax.block_until_ready((resized, boxes_out))

    # pure-JAX reference of the same (nearest-neighbor) resize + box scaling
    focal_len_px = 3.04 * (3280 / 3.68)
    s = (400.0 / focal_len_px) / target_gsd
    h_ref, w_ref = int(s * H), int(s * W)
    src_h = _nn_src_index(h_ref, H)
    src_w = _nn_src_index(w_ref, W)
    ref_resized = img[:, src_h, :][:, :, src_w]
    ref_boxes = boxes * jnp.array([s, s, s, s], dtype=jnp.float32)

    assert resized.shape == (C, h_ref, w_ref)
    assert jnp.allclose(resized, ref_resized, rtol=0.0, atol=1e-5)
    assert jnp.allclose(boxes_out, ref_boxes, rtol=1e-5, atol=1e-5)

    print("KERNEL_OK")
</pallas_src>

<mosaic_0001>
module attributes {stable_mosaic.version = 11 : i64} {
  func.func @_col_resample_kernel(%arg0: i32, %arg1: i32, %arg2: i32, %arg3: memref<1x48x16xbf16, #tpu.memory_space<vmem>>, %arg4: memref<16x128xbf16, #tpu.memory_space<vmem>>, %arg5: memref<1x48x128xf32, #tpu.memory_space<vmem>>) attributes {dimension_semantics = [#tpu.dimension_semantics<parallel>, #tpu.dimension_semantics<parallel>, #tpu.dimension_semantics<parallel>], iteration_bounds = array<i64: 3, 1, 1>, scalar_prefetch = 0 : i64, scratch_operands = 0 : i64, tpu.core_type = #tpu.core_type<tc>, window_params = [{transform_indices = @transform_0, window_bounds = array<i64: 1, 48, 16>}, {transform_indices = @transform_1, window_bounds = array<i64: 16, 128>}, {transform_indices = @transform_2, window_bounds = array<i64: 1, 48, 128>}]} {
    %c0 = arith.constant 0 : index
    %c0_0 = arith.constant 0 : index
    %c0_1 = arith.constant 0 : index
    %0 = vector.load %arg3[%c0, %c0_0, %c0_1] : memref<1x48x16xbf16, #tpu.memory_space<vmem>>, vector<1x48x16xbf16>
    %1 = vector.shape_cast %0 : vector<1x48x16xbf16> to vector<48x16xbf16>
    %c0_2 = arith.constant 0 : index
    %c0_3 = arith.constant 0 : index
    %2 = vector.load %arg4[%c0_2, %c0_3] : memref<16x128xbf16, #tpu.memory_space<vmem>>, vector<16x128xbf16>
    %cst = arith.constant dense<0.000000e+00> : vector<48x128xf32>
    %3 = tpu.matmul %1, %2, %cst {dimension_numbers = #tpu.dot_dimension_numbers<[1], [0], [0], [1], [0, 0, 1, 1], [], []>} : vector<48x16xbf16>, vector<16x128xbf16>, vector<48x128xf32> -> vector<48x128xf32>
    %c0_4 = arith.constant 0 : index
    %c0_5 = arith.constant 0 : index
    %c0_6 = arith.constant 0 : index
    %4 = vector.load %arg5[%c0_4, %c0_5, %c0_6] : memref<1x48x128xf32, #tpu.memory_space<vmem>>, vector<1x48x128xf32>
    %5 = vector.shape_cast %4 : vector<1x48x128xf32> to vector<48x128xf32>
    %6 = vector.shape_cast %3 : vector<48x128xf32> to vector<1x48x128xf32>
    tpu.vector_store %arg5[%c0_4, %c0_5, %c0_6], %6 {strides = array<i32>} : memref<1x48x128xf32, #tpu.memory_space<vmem>>, vector<1x48x128xf32>,
    return
  }
  func.func @transform_0(%arg0: i32, %arg1: i32, %arg2: i32) -> (i32, i32, i32) {
    %c0_i32 = arith.constant 0 : i32
    %c0_i32_0 = arith.constant 0 : i32
    return %arg0, %arg1, %c0_i32 : i32, i32, i32
  }
  func.func @transform_1(%arg0: i32, %arg1: i32, %arg2: i32) -> (i32, i32) {
    %c0_i32 = arith.constant 0 : i32
    %c0_i32_0 = arith.constant 0 : i32
    return %c0_i32, %arg2 : i32, i32
  }
  func.func @transform_2(%arg0: i32, %arg1: i32, %arg2: i32) -> (i32, i32, i32) {
    %c0_i32 = arith.constant 0 : i32
    return %arg0, %arg1, %arg2 : i32, i32, i32
  }
}

</mosaic_0001>

<llo_original>
// kernel: tpu_custom_call.1
$region0: #{tpu_custom_call.1}
  #allocation0 [shape = 'u32[]', space=smem, size = 0x4, offset = 0x4, fixed_abs, tag = 'smem constant byte address 0x4 - core index']
  #allocation1 [shape = 'u32[144,128]{1,0:T(1,128)}', space=vmem, size = 0x12000, scoped, tag = 'internal scratch']
  %s0 = inlined_call_operand.vmem [shape: bf16[3,48,16], index: 0, kind: input, shape index: {}]
  %s1 = inlined_call_operand.vmem [shape: bf16[16,128], index: 1, kind: input, shape index: {}]
  %s2 = inlined_call_operand.hbm [shape: f32[3,48,128], index: 2, kind: output, shape index: {}]
  %s3 = sld [smem:[#allocation0]]
  $region41: #{tpu_custom_call.1} parent=0
    _
  %s5 = ssub.s32 1, %s3
  %s6 = scalar_select 0, %s5, %s3
  $region1: #{tpu_custom_call.1} parent=0
    #allocation2 [shape = 'u8[49152]{0}', space=vmem, size = 0xc000, scoped, tag = 'output window, operand 0']
    #allocation3 [shape = 's32[2]{0}', space=sflag, size = 0x8, scoped, tag = 'scoped memory for tpu_custom_call.1']
    %7 = vsyncpa [#allocation3], 0
    %s8 = scalar_lea.sflag [#allocation3], 1
    %9 = vsyncpa %s8, 0
    loop: start=0, step=1, limit=5
    $region2: #{tpu_custom_call.1} parent=1 // loop_pre_header
      _
    $region3: #{tpu_custom_call.1} parent=1 // loop_header
      %s11 = sphi 0, %s15
      %p12 = scmp.ge.s32.totalorder %s11, 5
      %s18 = sphi 0, %s37
      %s19 = sphi 0, %s33
      %s20 = sphi 0, %s29
      %s21 = sphi 0, %s18
      %s22 = sphi 0, %s19
      %s23 = sphi 0, %s20
      %s24 = sphi 0, %s21
      %s25 = sphi 0, %s22
      %s26 = sphi 0, %s23
      %s42 = sphi 0, %s44
      %s45 = sphi 0, %s42
      %s46 = sphi 0, %s45
      %s62 = sphi 0, %s46
      %s68 = sphi 0, %s70
      %s71 = sphi 0, %s68
      %s72 = sphi 0, %s71
      %s88 = sphi 0, %s72
      %s98 = sphi 0, %s100
      %s101 = sphi 0, %s98
      %s102 = sphi 0, %s101
      %s118 = sphi 0, %s102
    $region4: #{tpu_custom_call.1} parent=1 // loop_header_branch
      %14 = sbr.rel (%p12) target = $region8
    $region5: #{tpu_custom_call.1} parent=1 // loop_body
      %s16 = ssub.s32 %s11, 1
      %s17 = ssub.s32 %s11, 2
      %s27 = sadd.s32 1, %s20
      %p28 = scmp.ge.s32.totalorder %s27, 1
      %s29 = scalar_select %p28, 0, %s27
      %s30 = sadd.s32 1, %s19
      %s31 = scalar_select %p28, %s30, %s19
      %p32 = scmp.ge.s32.totalorder %s31, 1
      %s33 = scalar_select %p32, 0, %s31
      %s34 = sadd.s32 1, %s18
      %s35 = scalar_select %p32, %s34, %s18
      %p36 = scmp.ge.s32.totalorder %s35, 3
      %s37 = scalar_select %p36, 0, %s35
      %s38 = ssub.s32 %s18, %s37
      %s39 = ssub.s32 %s19, %s33
      %s40 = sor.u32 %s38, %s39
      %p41 = scmp.eq.s32.totalorder %s40, 0
      %s43 = sadd.s32 %s42, 1
      %s44 = scalar_select %p41, %s42, %s43
      %p47 = pneg %p41
      %p48 = scmp.eq.s32.totalorder %s11, 2
      %p49 = por %p47, %p48
      %p50 = scmp.ne.s32.totalorder %s42, %s45
      %p51 = scmp.eq.s32.totalorder %s11, 0
      %p52 = por %p50, %p51
      %p53 = scmp.ne.s32.totalorder %s42, %s45
      %p54 = scmp.eq.s32.totalorder %s16, 2
      %p55 = por %p53, %p54
      %p56 = scmp.ne.s32.totalorder %s45, %s46
      %p57 = scmp.eq.s32.totalorder %s16, 0
      %p58 = por %p56, %p57
      %p59 = scmp.ne.s32.totalorder %s45, %s46
      %p60 = scmp.eq.s32.totalorder %s17, 2
      %p61 = por %p59, %p60
      %p63 = scmp.ne.s32.totalorder %s46, %s62
      %p64 = scmp.eq.s32.totalorder %s17, 0
      %p65 = por %p63, %p64
      %s66 = ssub.s32 %s20, %s29
      %p67 = scmp.eq.s32.totalorder %s66, 0
      %s69 = sadd.s32 %s68, 1
      %s70 = scalar_select %p67, %s68, %s69
      %p73 = pneg %p67
      %p74 = scmp.eq.s32.totalorder %s11, 2
      %p75 = por %p73, %p74
      %p76 = scmp.ne.s32.totalorder %s68, %s71
      %p77 = scmp.eq.s32.totalorder %s11, 0
      %p78 = por %p76, %p77
      %p79 = scmp.ne.s32.totalorder %s68, %s71
      %p80 = scmp.eq.s32.totalorder %s16, 2
      %p81 = por %p79, %p80
      %p82 = scmp.ne.s32.totalorder %s71, %s72
      %p83 = scmp.eq.s32.totalorder %s16, 0
      %p84 = por %p82, %p83
      %p85 = scmp.ne.s32.totalorder %s71, %s72
      %p86 = scmp.eq.s32.totalorder %s17, 2
      %p87 = por %p85, %p86
      %p89 = scmp.ne.s32.totalorder %s72, %s88
      %p90 = scmp.eq.s32.totalorder %s17, 0
      %p91 = por %p89, %p90
      %s92 = ssub.s32 %s18, %s37
      %s93 = ssub.s32 %s19, %s33
      %s94 = sor.u32 %s92, %s93
      %s95 = ssub.s32 %s20, %s29
      %s96 = sor.u32 %s94, %s95
      %p97 = scmp.eq.s32.totalorder %s96, 0
      %s99 = sadd.s32 %s98, 1
      %s100 = scalar_select %p97, %s98, %s99
      %p103 = pneg %p97
      %p104 = scmp.eq.s32.totalorder %s11, 2
      %p105 = por %p103, %p104
      %p106 = scmp.ne.s32.totalorder %s98, %s101
      %p107 = scmp.eq.s32.totalorder %s11, 0
      %p108 = por %p106, %p107
      %p109 = scmp.ne.s32.totalorder %s98, %s101
      %p110 = scmp.eq.s32.totalorder %s16, 2
      %p111 = por %p109, %p110
      %p112 = scmp.ne.s32.totalorder %s101, %s102
      %p113 = scmp.eq.s32.totalorder %s16, 0
      %p114 = por %p112, %p113
      %p115 = scmp.ne.s32.totalorder %s101, %s102
      %p116 = scmp.eq.s32.totalorder %s17, 2
      %p117 = por %p115, %p116
      %p119 = scmp.ne.s32.totalorder %s102, %s118
      %p120 = scmp.eq.s32.totalorder %s17, 0
      %p121 = por %p119, %p120
      %p122 = scmp.le.s32.totalorder 1, %s11
      %p123 = scmp.lt.s32.totalorder %s11, 4
      %p124 = pnand %p122, %p123
      %p125 = pneg %p124
      // Predicated region
      $region9: #{tpu_custom_call.1} parent=5 // pred_check
        _
      $region10: #{tpu_custom_call.1} parent=5 // pred_check_branch
        %127 = sbr.rel (%p124) target = $region12
      $region11: #{tpu_custom_call.1} parent=5 // pred_region
        %s128 = ssub.s32 %s11, 1
        // Predicated region
        $region13: #{tpu_custom_call.1} parent=11 // pred_check
          %p129 = pneg %p84
        $region14: #{tpu_custom_call.1} parent=11 // pred_check_branch
          %131 = sbr.rel (%p129) target = $region16
        $region15: #{tpu_custom_call.1} parent=11 // pred_region
          %p132 = scmp.lt.s32.totalorder %s23, 0
          %s133 = scalar_select %p132, %s23, 0
          %s134 = smul.addr %s133, 4
          %s135 = scalar_lea.vmem %s1, %s134
        $region16: #{tpu_custom_call.1} parent=11 // pred_fallthru
          _
      $region12: #{tpu_custom_call.1} parent=5 // pred_fallthru
        _
      %p136 = scmp.lt.s32.totalorder %s11, 3
      // Predicated region
      $region17: #{tpu_custom_call.1} parent=5 // pred_check
        %p137 = pneg %p136
      $region18: #{tpu_custom_call.1} parent=5 // pred_check_branch
        %139 = sbr.rel (%p137) target = $region20
      $region19: #{tpu_custom_call.1} parent=5 // pred_region
        // Predicated region
        $region21: #{tpu_custom_call.1} parent=19 // pred_check
          %p140 = pneg %p52
        $region22: #{tpu_custom_call.1} parent=19 // pred_check_branch
          %142 = sbr.rel (%p140) target = $region24
        $region23: #{tpu_custom_call.1} parent=19 // pred_region
          %s143 = smul.u32 6, %s19
          %p144 = scmp.lt.s32.totalorder %s18, 2
          %s145 = scalar_select %p144, %s18, 2
          %p146 = scmp.lt.s32.totalorder %s143, 5
          %s147 = scalar_select %p146, %s143, 5
          %s148 = smul.addr %s145, 6
          %s149 = sadd.s32 %s147, %s148
          %s150 = smul.addr %s149, 4
          %s151 = scalar_lea.vmem %s0, %s150
          %s152 = smul.u32 6, %s19
        $region24: #{tpu_custom_call.1} parent=19 // pred_fallthru
          _
      $region20: #{tpu_custom_call.1} parent=5 // pred_fallthru
        _
      %p153 = scmp.le.s32.totalorder 1, %s11
      %p154 = scmp.lt.s32.totalorder %s11, 4
      %p155 = pnand %p153, %p154
      %p156 = pneg %p155
      // Predicated region
      $region25: #{tpu_custom_call.1} parent=5 // pred_check
        _
      $region26: #{tpu_custom_call.1} parent=5 // pred_check_branch
        %158 = sbr.rel (%p155) target = $region28
      $region27: #{tpu_custom_call.1} parent=5 // pred_region
        %s159 = ssub.s32 %s11, 1
        %s160 = smul.u32 6, %s22
        %p161 = scmp.lt.s32.totalorder %s21, 2
        %s162 = scalar_select %p161, %s21, 2
        %p163 = scmp.lt.s32.totalorder %s160, 5
        %s164 = scalar_select %p163, %s160, 5
        %s165 = smul.addr %s162, 6
        %s166 = sadd.s32 %s164, %s165
        %s167 = smul.addr %s166, 4
        %s168 = scalar_lea.vmem %s0, %s167
        %p169 = pneg %p58
        %p170 = pneg %p55
        %p171 = scmp.lt.s32.totalorder %s23, 0
        %s172 = scalar_select %p171, %s23, 0
        %s173 = smul.addr %s172, 4
        %s174 = scalar_lea.vmem %s1, %s173
        %p175 = pneg %p84
        %p176 = pneg %p81
        %p177 = pneg %p114
        %p178 = pneg %p111
        %s179 = sand.u32 %s101, 1
        %s180 = scalar_lea.sflag [#allocation3], %s179
        %s181 = sand.u32 %s101, 1
        %s182 = smul.addr %s181, 48
        %s183 = scalar_lea.vmem [#allocation2], %s182
        %s184 = smul.u32 6, %s22
        %p185 = scmp.lt.s32.totalorder %s21, 2
        %s186 = scalar_select %p185, %s21, 2
        %p187 = scmp.lt.s32.totalorder %s184, 5
        %s188 = scalar_select %p187, %s184, 5
        %s189 = smul.addr %s186, 6
        %s190 = sadd.s32 %s188, %s189
        %s191 = smul.addr %s190, 4
        %s192 = scalar_lea.vmem %s0, %s191
        %s193 = smul.u32 6, %s22
        %p194 = scmp.lt.s32.totalorder %s23, 0
        %s195 = scalar_select %p194, %s23, 0
        %s196 = smul.addr %s195, 4
        %s197 = scalar_lea.vmem %s1, %s196
        %s198 = smul.u32 6, %s22
        %v200 = vld [vmem:[%s192] sm:$0xf]
        %v201 = vld [vmem:[%s192 + $0x4] sm:$0xf]
        %v202 = vld [vmem:[%s192 + $0x8] sm:$0xf]
        %v203 = vld [vmem:[%s192 + $0xc] sm:$0xf]
        %v204 = vld [vmem:[%s192 + $0x10] sm:$0xf]
        %v205 = vld [vmem:[%s192 + $0x14] sm:$0xf]
        %v206 = vld [vmem:[%s197] sm:$0xf]
        %v207 = vld [vmem:[%s197 + $0x4] sm:$0xf]
        %v214 = vunpack.c.l.b16 %v200
        %v215 = vunpack.c.l.b16 %v201
        %v216 = vunpack.c.l.b16 %v202
        %v217 = vunpack.c.l.b16 %v203
        %v218 = vunpack.c.l.b16 %v204
        %v219 = vunpack.c.l.b16 %v205
        %v220 = vpack.c.b16 %v215, %v214
        %v221 = vpack.c.b16 %v217, %v216
        %v222 = vpack.c.b16 %v219, %v218
        %v225 = vunpack.c.l.b16 %v206
        %v226 = vunpack.c.l.b16 %v207
        %v227 = vpack.c.b16 %v226, %v225
        %vm229 = vcmask 130048
        %v231 = vsel %vm229, %v220, 0
        %v234 = vsel %vm229, %v221, 0
        %v237 = vsel %vm229, %v222, 0
        %239 = vmatprep.subr.bf16.mxu0 0
        %240 = vmatpush1.bf16.msra.mxu0 %v227
        %241 = vmatprep.subr.bf16.mxu0 0
        %242 = vmatpush1.bf16.msra.mxu0 0
        %243 = vmatprep.subr.bf16.mxu0 0
        %244 = vmatpush1.bf16.msra.mxu0 0
        %245 = vmatprep.subr.bf16.mxu0 0
        %246 = vmatpush1.bf16.msra.mxu0 0
        %247 = vmatprep.subr.bf16.mxu0 0
        %248 = vmatpush1.bf16.msra.mxu0 0
        %249 = vmatprep.subr.bf16.mxu0 0
        %250 = vmatpush1.bf16.msra.mxu0 0
        %251 = vmatprep.subr.bf16.mxu0 0
        %252 = vmatpush1.bf16.msra.mxu0 0
        %253 = vmatprep.subr.bf16.mxu0 0
        %254 = vmatpush1.bf16.msra.mxu0 0
        %255 = vmatprep.subr.bf16.mxu0 0
        %256 = vmatpush1.bf16.msra.mxu0 0
        %257 = vmatprep.subr.bf16.mxu0 0
        %258 = vmatpush1.bf16.msra.mxu0 0
        %259 = vmatprep.subr.bf16.mxu0 0
        %260 = vmatpush1.bf16.msra.mxu0 0
        %261 = vmatprep.subr.bf16.mxu0 0
        %262 = vmatpush1.bf16.msra.mxu0 0
        %263 = vmatprep.subr.bf16.mxu0 0
        %264 = vmatpush1.bf16.msra.mxu0 0
        %265 = vmatprep.subr.bf16.mxu0 0
        %266 = vmatpush1.bf16.msra.mxu0 0
        %267 = vmatprep.subr.bf16.mxu0 0
        %268 = vmatpush1.bf16.msra.mxu0 0
        %269 = vmatprep.subr.bf16.mxu0 0
        %270 = vmatpush1.bf16.msra.mxu0 0
        %271 = vmatprep.mubr.bf16.mxu0 0
        %272 = vmatmul.mubr.bf16.gmra.mrb[0].mxu0 %v231
        %v273 = vpop.f32.mrb[0].mxu0
        %v274 = vadd.f32 0.0, %v273
        %v275 = vpop.f32.mrb[0].mxu0
        %v276 = vpop.f32.mrb[0].mxu0
        %v277 = vadd.f32 0.0, %v276
        %v278 = vpop.f32.mrb[0].mxu0
        %279 = vmatprep.mubr.bf16.mxu0 0
        %280 = vmatmul.mubr.bf16.gmra.mrb[0].mxu0 %v234
        %v281 = vpop.f32.mrb[0].mxu0
        %v282 = vadd.f32 0.0, %v281
        %v283 = vpop.f32.mrb[0].mxu0
        %v284 = vpop.f32.mrb[0].mxu0
        %v285 = vadd.f32 0.0, %v284
        %v286 = vpop.f32.mrb[0].mxu0
        %287 = vmatprep.mubr.bf16.mxu0 0
        %288 = vmatmul.mubr.bf16.gmra.mrb[0].mxu0 %v237
        %v289 = vpop.f32.mrb[0].mxu0
        %v290 = vadd.f32 0.0, %v289
        %v291 = vpop.f32.mrb[0].mxu0
        %v292 = vpop.f32.mrb[0].mxu0
        %v293 = vadd.f32 0.0, %v292
        %v294 = vpop.f32.mrb[0].mxu0
        %295 = vdwg.mxu0
        %296 = vst [vmem:[%s183] sm:$0xff] %v274
        %297 = vst [vmem:[%s183 + $0x8] sm:$0xff] %v277
        %298 = vst [vmem:[%s183 + $0x10] sm:$0xff] %v282
        %299 = vst [vmem:[%s183 + $0x18] sm:$0xff] %v285
        %300 = vst [vmem:[%s183 + $0x20] sm:$0xff] %v290
        %301 = vst [vmem:[%s183 + $0x28] sm:$0xff] %v293
        %s302 = sand.u32 %s101, 1
        %s303 = scalar_lea.sflag [#allocation3], %s302
        %s304 = sand.u32 %s101, 1
        %s305 = smul.addr %s304, 48
        %s306 = scalar_lea.vmem [#allocation2], %s305
        // Predicated region
        $region29: #{tpu_custom_call.1} parent=27 // pred_check
          %p307 = pneg %p111
        $region30: #{tpu_custom_call.1} parent=27 // pred_check_branch
          %309 = sbr.rel (%p307) target = $region32
        $region31: #{tpu_custom_call.1} parent=27 // pred_region
          %s310 = smul.u32 6, %s22
          %s312 = ssub.s32 768, 768
          %313 = vsyncadd %s303, %s312
          %s314 = sadd.s32 %s23, %s310
          %s315 = smul.addr %s21, 6
          %s316 = sadd.s32 %s314, %s315
          %s317 = smul.addr %s316, 128
          %s318 = scalar_lea.hbm %s2, %s317
          %s319 = sshll.u32 %s306, 4
          %s320 = int_to_ptr.vmem [resolvable:$true] %s319
          %325 = dma.vmem_to_hbm [thread:$0]  %s320, 768, %s318, %s303, 128, 128, 8
        $region32: #{tpu_custom_call.1} parent=27 // pred_fallthru
          _
      $region28: #{tpu_custom_call.1} parent=5 // pred_fallthru
        _
      %p326 = scmp.le.s32.totalorder 2, %s11
      // Predicated region
      $region33: #{tpu_custom_call.1} parent=5 // pred_check
        %p327 = pneg %p326
      $region34: #{tpu_custom_call.1} parent=5 // pred_check_branch
        %329 = sbr.rel (%p327) target = $region36
      $region35: #{tpu_custom_call.1} parent=5 // pred_region
        %s330 = ssub.s32 %s11, 2
        // Predicated region
        $region37: #{tpu_custom_call.1} parent=35 // pred_check
          %p331 = pneg %p117
        $region38: #{tpu_custom_call.1} parent=35 // pred_check_branch
          %333 = sbr.rel (%p331) target = $region40
        $region39: #{tpu_custom_call.1} parent=35 // pred_region
          %s334 = sand.u32 %s102, 1
          %s335 = scalar_lea.sflag [#allocation3], %s334
          %s336 = sand.u32 %s102, 1
          %s337 = smul.addr %s336, 48
          %s338 = scalar_lea.vmem [#allocation2], %s337
          %339 = dma.done %s335, 768
        $region40: #{tpu_custom_call.1} parent=35 // pred_fallthru
          _
      $region36: #{tpu_custom_call.1} parent=5 // pred_fallthru
        _
    $region6: #{tpu_custom_call.1} parent=1 // loop_footer
      %s15 = sadd.s32 1, %s11
    $region7: #{tpu_custom_call.1} parent=1 // loop_footer_branch
      %10 = sbr.rel target = $region3
    $region8: #{tpu_custom_call.1} parent=1 // loop_exit
      _
    %340 = vsyncpa [#allocation3], 1
    %s341 = scalar_lea.sflag [#allocation3], 1
    %342 = vsyncpa %s341, 1

</llo_original>
